<compile_context>
chip_gen: v5e
topology: v5e:2x2
jax: 0.10.0
libtpu: 0.0.40
codegen_flags: <defaults>
</compile_context>

<pallas_src>
import functools

import jax
import jax.numpy as jnp
from jax.experimental import pallas as pl
from jax.experimental.pallas import tpu as pltpu


# --------------------------------------------------------------------------
# Chip-aware sizing helpers
# --------------------------------------------------------------------------

def _round_down(x, m):
    return (x // m) * m


def _ceil_to(x, m):
    return -(-x // m) * m


@functools.lru_cache(maxsize=1)
def _vmem_params():
    """Return (per-stage byte budget, scoped-vmem limit) for the local chip.

    v5e/v6e (128 MiB VMEM): 4 MiB per stage (in+out), 64 MiB scoped limit.
    v7x     ( 64 MiB VMEM): 2 MiB per stage (in+out), 32 MiB scoped limit.
    With double buffering the resident working set is ~2x the stage budget.
    """
    try:
        cap = int(pltpu.get_tpu_info().vmem_capacity_bytes)
    except Exception:
        cap = 64 * 1024 * 1024          # conservative default (v7x-sized)
    stage_budget = min(max(cap // 32, 1 << 20), 4 << 20)
    vmem_limit = min(cap // 2, 64 << 20)
    return stage_budget, vmem_limit


def _pick_tile(total, unit, bytes_per_unit, budget_bytes):
    """Largest tile (multiple of `unit`) whose block stays under `budget_bytes`.

    Returns `total` (always a legal full-extent block dim) when everything fits
    in one block or the array is smaller than one unit; otherwise a multiple of
    `unit` in [unit, round_down(total, unit)], leaving any ragged tail to the
    cdiv grid as a partial trailing block (never a full-extent VMEM blowup).
    """
    cap = budget_bytes // max(1, bytes_per_unit)
    if cap >= total or total <= unit:
        return total
    return max(unit, _round_down(min(cap, total), unit))


# --------------------------------------------------------------------------
# Kernels
# --------------------------------------------------------------------------

def _transpose2d(x):
    """(c, s) -> (s, c); pads the sublane dim to a multiple of 8 so the XLU
    transpose always sees an aligned shape, then drops the pad lanes."""
    c, s = x.shape
    cpad = _ceil_to(c, 8)
    if cpad != c:
        x = jnp.concatenate([x, jnp.zeros((cpad - c, s), x.dtype)], axis=0)
        return x.T[:, :c]
    return x.T


def _transpose_kernel(x_ref, o_ref):
    # x_ref: (tC, tS) -> o_ref: (tS, tC).  Used by the wide and narrow paths.
    o_ref[...] = _transpose2d(x_ref[...])


def _packed_kernel(x_ref, o_ref):
    # x_ref: (C, tR*G) -> o_ref: (tR, G*C) with G*C == 128.
    # Transpose to (tS, C), then fold G = 128//C consecutive pixels into one
    # 128-lane output row so stores and writeback DMA are fully lane-dense.
    # TODO(synk): for bf16/int8 inputs, pack channel pairs/quads into 32-bit
    # containers with pltpu.bitcast before the transpose to shrink XLU work.
    tr, lanes = o_ref.shape
    o_ref[...] = _transpose2d(x_ref[...]).reshape(tr, lanes)


# --------------------------------------------------------------------------
# pallas_call builders
# --------------------------------------------------------------------------

def _compiler_params(n_axes, vmem_limit):
    return pltpu.CompilerParams(
        dimension_semantics=("parallel",) * n_axes,
        vmem_limit_bytes=vmem_limit,
    )


def _bytes_cost(x2):
    return pl.CostEstimate(
        flops=0, transcendentals=0,
        bytes_accessed=2 * x2.size * jnp.dtype(x2.dtype).itemsize)


def _call_wide(x2, stage_budget, vmem_limit):
    """C % 128 == 0: batched dense (tC, tS) -> (tS, tC) tile transpose."""
    N, C, S = x2.shape
    item = jnp.dtype(x2.dtype).itemsize
    tC = C if C <= 1024 else 512                      # both 128-multiples
    tS = _pick_tile(S, 128, 2 * tC * item, stage_budget)
    grid = (N, pl.cdiv(C, tC), pl.cdiv(S, tS))
    return pl.pallas_call(
        _transpose_kernel,
        out_shape=jax.ShapeDtypeStruct((N, S, C), x2.dtype),
        grid=grid,
        in_specs=[pl.BlockSpec((None, tC, tS), lambda n, c, s: (n, c, s))],
        out_specs=pl.BlockSpec((None, tS, tC), lambda n, c, s: (n, s, c)),
        compiler_params=_compiler_params(len(grid), vmem_limit),
        cost_estimate=_bytes_cost(x2),
    )(x2)


def _call_packed(x2, tR, vmem_limit):
    """C | 128 and S % (128//C) == 0: lane-dense grouped-NHWC output.

    Output is the (N, S//G, G*C) view of NHWC (G = 128//C); each 128-lane row
    holds G consecutive pixels, so both the VMEM stores and the writeback DMA
    are dense and contiguous even for tiny C.
    """
    N, C, S = x2.shape
    G = 128 // C
    R = S // G
    tS = tR * G if tR < R else S
    grid = (N, pl.cdiv(R, tR))
    return pl.pallas_call(
        _packed_kernel,
        out_shape=jax.ShapeDtypeStruct((N, R, G * C), x2.dtype),
        grid=grid,
        in_specs=[pl.BlockSpec((None, C, tS), lambda n, r: (n, 0, r))],
        out_specs=pl.BlockSpec((None, tR, G * C), lambda n, r: (n, r, 0)),
        compiler_params=_compiler_params(len(grid), vmem_limit),
        cost_estimate=_bytes_cost(x2),
    )(x2)


def _call_narrow(x2, stage_budget, vmem_limit):
    """Fallback: direct (C, tS) -> (tS, C) blocks (lane-sparse output)."""
    # TODO(synk): this path issues C-wide masked stores and a strided writeback
    # DMA (C*itemsize bytes per row) -- the documented slow path.  It is only
    # reached when C does not divide 128, H*W % (128//C) != 0, or the packed
    # relayout is rejected by this Mosaic build (see _packed_path_compiles).
    N, C, S = x2.shape
    item = jnp.dtype(x2.dtype).itemsize
    per_elem = (_ceil_to(C, 8) + _ceil_to(C, 128)) * item   # VMEM-padded in+out
    tS = _pick_tile(S, 128, per_elem, stage_budget)
    grid = (N, pl.cdiv(S, tS))
    return pl.pallas_call(
        _transpose_kernel,
        out_shape=jax.ShapeDtypeStruct((N, S, C), x2.dtype),
        grid=grid,
        in_specs=[pl.BlockSpec((None, C, tS), lambda n, s: (n, 0, s))],
        out_specs=pl.BlockSpec((None, tS, C), lambda n, s: (n, s, 0)),
        compiler_params=_compiler_params(len(grid), vmem_limit),
        cost_estimate=_bytes_cost(x2),
    )(x2)


# --------------------------------------------------------------------------
# Static capability probe for the packed path
# --------------------------------------------------------------------------

@functools.lru_cache(maxsize=None)
def _packed_path_compiles(dtype_name, C, tR):
    """One-time, cached capability probe (static path decision).

    The (tS, C) -> (tR, 128) in-register fold is the only shape/dtype-dependent
    lowering in this file, and a rejection surfaces inside the Mosaic backend
    pass (i.e. at XLA compile time, after Pallas tracing), so the probe drives
    a tiny single-tile instance through a full AOT compile.  No runtime
    try/except around user calls, no mutable module globals.
    """
    G = 128 // C
    probe = jax.ShapeDtypeStruct((1, C, tR * G), jnp.dtype(dtype_name))
    _, vmem_limit = _vmem_params()
    try:
        jax.jit(lambda a: _call_packed(a, tR, vmem_limit)).lower(probe).compile()
        return True
    except Exception:
        return False


# --------------------------------------------------------------------------
# Public wrapper (forward pass of NCHWtoNHWC)
# --------------------------------------------------------------------------

def nchw_to_nhwc(x, *, max_block_bytes=None):
    """Pallas TPU equivalent of torch `x.permute(0, 2, 3, 1)` on NCHW input."""
    N, C, H, W = x.shape
    S = H * W
    x2 = x.reshape(N, C, S)                       # contiguous wrapper view: free
    stage_budget, vmem_limit = _vmem_params()
    if max_block_bytes is not None:               # test hook: force small tiles
        stage_budget = int(max_block_bytes)

    if C % 128 == 0:
        out = _call_wide(x2, stage_budget, vmem_limit)          # (N, S, C)
        return out.reshape(N, H, W, C)

    if C < 128 and 128 % C == 0 and S % (128 // C) == 0:
        G = 128 // C
        item = jnp.dtype(x.dtype).itemsize
        unit = max(8, C)                           # keeps tS a 128-multiple
        row_bytes = (_ceil_to(C, 8) * G + 128) * item           # in + out / row
        tR = _pick_tile(S // G, unit, row_bytes, stage_budget)
        if _packed_path_compiles(str(jnp.dtype(x.dtype)), C, tR):
            out = _call_packed(x2, tR, vmem_limit)              # (N, S//G, 128)
            return out.reshape(N, H, W, C)        # contiguous reshape: free

    out = _call_narrow(x2, stage_budget, vmem_limit)            # (N, S, C)
    return out.reshape(N, H, W, C)


# --------------------------------------------------------------------------
# Self-test
# --------------------------------------------------------------------------

if __name__ == "__main__":
    key = jax.random.PRNGKey(0)
    k1, k2, k3, k4 = jax.random.split(key, 4)

    # Small NCHW conv-style input: batch=2, channels=4, 16x16 spatial.
    # Exercises the packed lane-dense path (or the narrow fallback if the
    # packed relayout is unsupported on this Mosaic build).
    x = jax.random.normal(k1, (2, 4, 16, 16), dtype=jnp.float32)
    ref = jnp.transpose(x, (0, 2, 3, 1))
    out = jax.block_until_ready(nchw_to_nhwc(x))
    assert out.shape == (2, 16, 16, 4), out.shape
    assert out.dtype == x.dtype
    assert jnp.array_equal(out, ref), "mismatch vs reference permute (C=4)"

    # Force several spatial tiles to exercise the multi-step grid / index maps.
    x_big = jax.random.normal(k2, (1, 4, 32, 32), dtype=jnp.float32)
    ref_big = jnp.transpose(x_big, (0, 2, 3, 1))
    out_big = jax.block_until_ready(nchw_to_nhwc(x_big, max_block_bytes=16 * 1024))
    assert jnp.array_equal(out_big, ref_big), "mismatch vs reference (tiled)"

    # Lane-aligned channel count exercises the wide (C % 128 == 0) path.
    x_wide = jax.random.normal(k3, (2, 128, 8, 16), dtype=jnp.float32)
    ref_wide = jnp.transpose(x_wide, (0, 2, 3, 1))
    out_wide = jax.block_until_ready(nchw_to_nhwc(x_wide))
    assert out_wide.shape == (2, 8, 16, 128)
    assert jnp.array_equal(out_wide, ref_wide), "mismatch vs reference (C=128)"

    # Channel count that does not divide 128 exercises the narrow fallback.
    x_odd = jax.random.normal(k4, (2, 12, 16, 16), dtype=jnp.float32)
    ref_odd = jnp.transpose(x_odd, (0, 2, 3, 1))
    out_odd = jax.block_until_ready(nchw_to_nhwc(x_odd))
    assert jnp.array_equal(out_odd, ref_odd), "mismatch vs reference (C=12)"

    print("KERNEL_OK")
</pallas_src>

<mosaic_0001>
module attributes {stable_mosaic.version = 11 : i64} {
  func.func @_transpose_kernel(%arg0: i32, %arg1: i32, %arg2: memref<1x4x256xf32, #tpu.memory_space<vmem>>, %arg3: memref<1x256x4xf32, #tpu.memory_space<vmem>>) attributes {dimension_semantics = [#tpu.dimension_semantics<parallel>, #tpu.dimension_semantics<parallel>], iteration_bounds = array<i64: 2, 1>, scalar_prefetch = 0 : i64, scratch_operands = 0 : i64, tpu.core_type = #tpu.core_type<tc>, window_params = [{transform_indices = @transform_0, window_bounds = array<i64: 1, 4, 256>}, {transform_indices = @transform_1, window_bounds = array<i64: 1, 256, 4>}]} {
    %c0 = arith.constant 0 : index
    %c0_0 = arith.constant 0 : index
    %c0_1 = arith.constant 0 : index
    %0 = vector.load %arg2[%c0, %c0_0, %c0_1] : memref<1x4x256xf32, #tpu.memory_space<vmem>>, vector<1x4x256xf32>
    %1 = vector.shape_cast %0 : vector<1x4x256xf32> to vector<4x256xf32>
    %cst = arith.constant 0.000000e+00 : f32
    %2 = vector.broadcast %cst : f32 to vector<4x256xf32>
    %3 = tpu.concatenate %1, %2 in 0 : vector<4x256xf32>, vector<4x256xf32> -> vector<8x256xf32>
    %4 = tpu.transpose %3, [1, 0] : vector<8x256xf32> -> vector<256x8xf32>
    %5 = vector.extract_strided_slice %4 {offsets = [0, 0], sizes = [256, 4], strides = [1, 1]} : vector<256x8xf32> to vector<256x4xf32>
    %c0_2 = arith.constant 0 : index
    %c0_3 = arith.constant 0 : index
    %c0_4 = arith.constant 0 : index
    %6 = vector.load %arg3[%c0_2, %c0_3, %c0_4] : memref<1x256x4xf32, #tpu.memory_space<vmem>>, vector<1x256x4xf32>
    %7 = vector.shape_cast %6 : vector<1x256x4xf32> to vector<256x4xf32>
    %8 = vector.shape_cast %5 : vector<256x4xf32> to vector<1x256x4xf32>
    tpu.vector_store %arg3[%c0_2, %c0_3, %c0_4], %8 {strides = array<i32>} : memref<1x256x4xf32, #tpu.memory_space<vmem>>, vector<1x256x4xf32>,
    return
  }
  func.func @transform_0(%arg0: i32, %arg1: i32) -> (i32, i32, i32) {
    %c0_i32 = arith.constant 0 : i32
    %c0_i32_0 = arith.constant 0 : i32
    return %arg0, %c0_i32, %arg1 : i32, i32, i32
  }
  func.func @transform_1(%arg0: i32, %arg1: i32) -> (i32, i32, i32) {
    %c0_i32 = arith.constant 0 : i32
    %c0_i32_0 = arith.constant 0 : i32
    return %arg0, %arg1, %c0_i32 : i32, i32, i32
  }
}

</mosaic_0001>

<llo_original>
// kernel: tpu_custom_call.1
$region0: #{tpu_custom_call.1}
  #allocation0 [shape = 'u32[]', space=smem, size = 0x4, offset = 0x4, fixed_abs, tag = 'smem constant byte address 0x4 - core index']
  #allocation1 [shape = 'u32[72,128]{1,0:T(1,128)}', space=vmem, size = 0x9000, scoped, tag = 'internal scratch']
  %s0 = inlined_call_operand.hbm [shape: f32[2,4,256], index: 0, kind: input, shape index: {}]
  %s1 = inlined_call_operand.vmem [shape: f32[2,256,4], index: 1, kind: output, shape index: {}]
  %s2 = sld [smem:[#allocation0]]
  $region41: #{tpu_custom_call.1} parent=0
    _
  %s4 = ssub.s32 1, %s2
  %s5 = scalar_select 0, %s4, %s2
  $region1: #{tpu_custom_call.1} parent=0
    #allocation2 [shape = 'u8[8192]{0}', space=vmem, size = 0x2000, scoped, tag = 'input window, operand 0']
    #allocation3 [shape = 's32[2]{0}', space=sflag, size = 0x8, scoped, tag = 'scoped memory for tpu_custom_call.1']
    %6 = vsyncpa [#allocation3], 0
    %s7 = scalar_lea.sflag [#allocation3], 1
    %8 = vsyncpa %s7, 0
    loop: start=0, step=1, limit=4
    $region2: #{tpu_custom_call.1} parent=1 // loop_pre_header
      _
    $region3: #{tpu_custom_call.1} parent=1 // loop_header
      %s10 = sphi 0, %s14
      %p11 = scmp.ge.s32.totalorder %s10, 4
      %s17 = sphi 0, %s29
      %s18 = sphi 0, %s25
      %s19 = sphi 0, %s17
      %s20 = sphi 0, %s18
      %s21 = sphi 0, %s19
      %s22 = sphi 0, %s20
      %s34 = sphi 0, %s36
      %s37 = sphi 0, %s34
      %s38 = sphi 0, %s37
      %s54 = sphi 0, %s38
      %s62 = sphi 0, %s64
      %s65 = sphi 0, %s62
      %s66 = sphi 0, %s65
      %s82 = sphi 0, %s66
    $region4: #{tpu_custom_call.1} parent=1 // loop_header_branch
      %13 = sbr.rel (%p11) target = $region8
    $region5: #{tpu_custom_call.1} parent=1 // loop_body
      %s15 = ssub.s32 %s10, 1
      %s16 = ssub.s32 %s10, 2
      %s23 = sadd.s32 1, %s18
      %p24 = scmp.ge.s32.totalorder %s23, 1
      %s25 = scalar_select %p24, 0, %s23
      %s26 = sadd.s32 1, %s17
      %s27 = scalar_select %p24, %s26, %s17
      %p28 = scmp.ge.s32.totalorder %s27, 2
      %s29 = scalar_select %p28, 0, %s27
      %s30 = ssub.s32 %s17, %s29
      %s31 = ssub.s32 %s18, %s25
      %s32 = sor.u32 %s30, %s31
      %p33 = scmp.eq.s32.totalorder %s32, 0
      %s35 = sadd.s32 %s34, 1
      %s36 = scalar_select %p33, %s34, %s35
      %p39 = pneg %p33
      %p40 = scmp.eq.s32.totalorder %s10, 1
      %p41 = por %p39, %p40
      %p42 = scmp.ne.s32.totalorder %s34, %s37
      %p43 = scmp.eq.s32.totalorder %s10, 0
      %p44 = por %p42, %p43
      %p45 = scmp.ne.s32.totalorder %s34, %s37
      %p46 = scmp.eq.s32.totalorder %s15, 1
      %p47 = por %p45, %p46
      %p48 = scmp.ne.s32.totalorder %s37, %s38
      %p49 = scmp.eq.s32.totalorder %s15, 0
      %p50 = por %p48, %p49
      %p51 = scmp.ne.s32.totalorder %s37, %s38
      %p52 = scmp.eq.s32.totalorder %s16, 1
      %p53 = por %p51, %p52
      %p55 = scmp.ne.s32.totalorder %s38, %s54
      %p56 = scmp.eq.s32.totalorder %s16, 0
      %p57 = por %p55, %p56
      %s58 = ssub.s32 %s17, %s29
      %s59 = ssub.s32 %s18, %s25
      %s60 = sor.u32 %s58, %s59
      %p61 = scmp.eq.s32.totalorder %s60, 0
      %s63 = sadd.s32 %s62, 1
      %s64 = scalar_select %p61, %s62, %s63
      %p67 = pneg %p61
      %p68 = scmp.eq.s32.totalorder %s10, 1
      %p69 = por %p67, %p68
      %p70 = scmp.ne.s32.totalorder %s62, %s65
      %p71 = scmp.eq.s32.totalorder %s10, 0
      %p72 = por %p70, %p71
      %p73 = scmp.ne.s32.totalorder %s62, %s65
      %p74 = scmp.eq.s32.totalorder %s15, 1
      %p75 = por %p73, %p74
      %p76 = scmp.ne.s32.totalorder %s65, %s66
      %p77 = scmp.eq.s32.totalorder %s15, 0
      %p78 = por %p76, %p77
      %p79 = scmp.ne.s32.totalorder %s65, %s66
      %p80 = scmp.eq.s32.totalorder %s16, 1
      %p81 = por %p79, %p80
      %p83 = scmp.ne.s32.totalorder %s66, %s82
      %p84 = scmp.eq.s32.totalorder %s16, 0
      %p85 = por %p83, %p84
      %p86 = scmp.le.s32.totalorder 1, %s10
      %p87 = scmp.lt.s32.totalorder %s10, 3
      %p88 = pnand %p86, %p87
      %p89 = pneg %p88
      // Predicated region
      $region9: #{tpu_custom_call.1} parent=5 // pred_check
        _
      $region10: #{tpu_custom_call.1} parent=5 // pred_check_branch
        %91 = sbr.rel (%p88) target = $region12
      $region11: #{tpu_custom_call.1} parent=5 // pred_region
        %s92 = ssub.s32 %s10, 1
      $region12: #{tpu_custom_call.1} parent=5 // pred_fallthru
        _
      %p93 = scmp.lt.s32.totalorder %s10, 2
      // Predicated region
      $region13: #{tpu_custom_call.1} parent=5 // pred_check
        %p94 = pneg %p93
      $region14: #{tpu_custom_call.1} parent=5 // pred_check_branch
        %96 = sbr.rel (%p94) target = $region16
      $region15: #{tpu_custom_call.1} parent=5 // pred_region
        // Predicated region
        $region17: #{tpu_custom_call.1} parent=15 // pred_check
          %p97 = pneg %p44
        $region18: #{tpu_custom_call.1} parent=15 // pred_check_branch
          %99 = sbr.rel (%p97) target = $region20
        $region19: #{tpu_custom_call.1} parent=15 // pred_region
          %s100 = sand.u32 %s34, 1
          %s101 = scalar_lea.sflag [#allocation3], %s100
          %s102 = sand.u32 %s34, 1
          %s103 = smul.addr %s102, 8
          %s104 = scalar_lea.vmem [#allocation2], %s103
          %s105 = smul.u32 2, %s18
          %107 = vsyncadd %s101, 0
          %s108 = smul.addr %s17, 2
          %s109 = sadd.s32 %s105, %s108
          %s110 = smul.addr %s109, 4
          %s111 = scalar_lea.hbm %s0, %s110
          %s113 = sshll.u32 %s111, 4
          %s114 = int_to_ptr.hbm [resolvable:$true] %s113
          %s115 = sshll.u32 %s104, 4
          %s116 = int_to_ptr.vmem [resolvable:$true] %s115
          %118 = dma.hbm_to_vmem [thread:$0]  %s114, 128, %s116, %s101
        $region20: #{tpu_custom_call.1} parent=15 // pred_fallthru
          _
      $region16: #{tpu_custom_call.1} parent=5 // pred_fallthru
        _
      %p119 = scmp.le.s32.totalorder 1, %s10
      %p120 = scmp.lt.s32.totalorder %s10, 3
      %p121 = pnand %p119, %p120
      %p122 = pneg %p121
      // Predicated region
      $region21: #{tpu_custom_call.1} parent=5 // pred_check
        _
      $region22: #{tpu_custom_call.1} parent=5 // pred_check_branch
        %124 = sbr.rel (%p121) target = $region24
      $region23: #{tpu_custom_call.1} parent=5 // pred_region
        %s125 = ssub.s32 %s10, 1
        %s126 = sand.u32 %s37, 1
        %s127 = scalar_lea.sflag [#allocation3], %s126
        %s128 = sand.u32 %s37, 1
        %s129 = smul.addr %s128, 8
        %s130 = scalar_lea.vmem [#allocation2], %s129
        // Predicated region
        $region25: #{tpu_custom_call.1} parent=23 // pred_check
          %p131 = pneg %p50
        $region26: #{tpu_custom_call.1} parent=23 // pred_check_branch
          %133 = sbr.rel (%p131) target = $region28
        $region27: #{tpu_custom_call.1} parent=23 // pred_region
          %135 = dma.done %s127, 128
        $region28: #{tpu_custom_call.1} parent=23 // pred_fallthru
          _
        %s136 = sand.u32 %s37, 1
        %s137 = scalar_lea.sflag [#allocation3], %s136
        %s138 = sand.u32 %s37, 1
        %s139 = smul.addr %s138, 8
        %s140 = scalar_lea.vmem [#allocation2], %s139
        %p141 = pneg %p50
        %p142 = pneg %p47
        %p143 = pneg %p78
        %p144 = pneg %p75
        %s145 = smul.u32 32, %s20
        %p146 = scmp.lt.s32.totalorder %s19, 1
        %s147 = scalar_select %p146, %s19, 1
        %p148 = scmp.lt.s32.totalorder %s145, 31
        %s149 = scalar_select %p148, %s145, 31
        %s150 = smul.addr %s147, 32
        %s151 = sadd.s32 %s149, %s150
        %s152 = smul.addr %s151, 8
        %s153 = scalar_lea.vmem %s1, %s152
        %s154 = smul.u32 2, %s20
        %s155 = smul.u32 32, %s20
        %p156 = scmp.lt.s32.totalorder %s19, 1
        %s157 = scalar_select %p156, %s19, 1
        %p158 = scmp.lt.s32.totalorder %s155, 31
        %s159 = scalar_select %p158, %s155, 31
        %s160 = smul.addr %s157, 32
        %s161 = sadd.s32 %s159, %s160
        %s162 = smul.addr %s161, 8
        %s163 = scalar_lea.vmem %s1, %s162
        %s164 = smul.u32 32, %s20
        %v165 = vld [vmem:[%s130] sm:$0xff]
        %167 = vst [vmem:[#allocation1] ss:$2 sm:$0xff] %v165
        %v168 = vld.sshfl [vmem:[#allocation1] sm:$0xff pattern:$0x75316420]
        %v169 = vld.sshfl [vmem:[#allocation1 + $0x8] sm:$0xff pattern:$0x75316420]
        %vm172 = vcmask 1043456
        %v173 = vsel %vm172, %v168, 0.0
        %v174 = vsel %vm172, %v169, 0.0
        %175 = vxpose.xlu0.b32.start [1/16] %v173, 128
        %176 = vxpose.xlu0.b32.cont [2/16] 0.0, 128
        %177 = vxpose.xlu0.b32.cont [3/16] 0.0, 128
        %178 = vxpose.xlu0.b32.cont [4/16] 0.0, 128
        %179 = vxpose.xlu0.b32.cont [5/16] 0.0, 128
        %180 = vxpose.xlu0.b32.cont [6/16] 0.0, 128
        %181 = vxpose.xlu0.b32.cont [7/16] 0.0, 128
        %182 = vxpose.xlu0.b32.cont [8/16] 0.0, 128
        %183 = vxpose.xlu0.b32.cont [9/16] 0.0, 128
        %184 = vxpose.xlu0.b32.cont [10/16] 0.0, 128
        %185 = vxpose.xlu0.b32.cont [11/16] 0.0, 128
        %186 = vxpose.xlu0.b32.cont [12/16] 0.0, 128
        %187 = vxpose.xlu0.b32.cont [13/16] 0.0, 128
        %188 = vxpose.xlu0.b32.cont [14/16] 0.0, 128
        %189 = vxpose.xlu0.b32.cont [15/16] 0.0, 128
        %190 = vxpose.xlu0.b32.end [16/16] 0.0, 128
        %v191 = vpop.trf.xlu0
        %v192 = vpop.trf.xlu0
        %v193 = vpop.trf.xlu0
        %v194 = vpop.trf.xlu0
        %v195 = vpop.trf.xlu0
        %v196 = vpop.trf.xlu0
        %v197 = vpop.trf.xlu0
        %v198 = vpop.trf.xlu0
        %v199 = vpop.trf.xlu0
        %v200 = vpop.trf.xlu0
        %v201 = vpop.trf.xlu0
        %v202 = vpop.trf.xlu0
        %v203 = vpop.trf.xlu0
        %v204 = vpop.trf.xlu0
        %v205 = vpop.trf.xlu0
        %v206 = vpop.trf.xlu0
        %207 = vxpose.xlu0.b32.start [1/16] %v174, 128
        %208 = vxpose.xlu0.b32.cont [2/16] 0.0, 128
        %209 = vxpose.xlu0.b32.cont [3/16] 0.0, 128
        %210 = vxpose.xlu0.b32.cont [4/16] 0.0, 128
        %211 = vxpose.xlu0.b32.cont [5/16] 0.0, 128
        %212 = vxpose.xlu0.b32.cont [6/16] 0.0, 128
        %213 = vxpose.xlu0.b32.cont [7/16] 0.0, 128
        %214 = vxpose.xlu0.b32.cont [8/16] 0.0, 128
        %215 = vxpose.xlu0.b32.cont [9/16] 0.0, 128
        %216 = vxpose.xlu0.b32.cont [10/16] 0.0, 128
        %217 = vxpose.xlu0.b32.cont [11/16] 0.0, 128
        %218 = vxpose.xlu0.b32.cont [12/16] 0.0, 128
        %219 = vxpose.xlu0.b32.cont [13/16] 0.0, 128
        %220 = vxpose.xlu0.b32.cont [14/16] 0.0, 128
        %221 = vxpose.xlu0.b32.cont [15/16] 0.0, 128
        %222 = vxpose.xlu0.b32.end [16/16] 0.0, 128
        %v223 = vpop.trf.xlu0
        %v224 = vpop.trf.xlu0
        %v225 = vpop.trf.xlu0
        %v226 = vpop.trf.xlu0
        %v227 = vpop.trf.xlu0
        %v228 = vpop.trf.xlu0
        %v229 = vpop.trf.xlu0
        %v230 = vpop.trf.xlu0
        %v231 = vpop.trf.xlu0
        %v232 = vpop.trf.xlu0
        %v233 = vpop.trf.xlu0
        %v234 = vpop.trf.xlu0
        %v235 = vpop.trf.xlu0
        %v236 = vpop.trf.xlu0
        %v237 = vpop.trf.xlu0
        %v238 = vpop.trf.xlu0
        %vm239 = vcmask 31744
        %240 = vst.msk [vmem:[%s163] sm:$0xff] %vm239, %v191
        %241 = vst.msk [vmem:[%s163 + $0x8] sm:$0xff] %vm239, %v192
        %242 = vst.msk [vmem:[%s163 + $0x10] sm:$0xff] %vm239, %v193
        %243 = vst.msk [vmem:[%s163 + $0x18] sm:$0xff] %vm239, %v194
        %244 = vst.msk [vmem:[%s163 + $0x20] sm:$0xff] %vm239, %v195
        %245 = vst.msk [vmem:[%s163 + $0x28] sm:$0xff] %vm239, %v196
        %246 = vst.msk [vmem:[%s163 + $0x30] sm:$0xff] %vm239, %v197
        %247 = vst.msk [vmem:[%s163 + $0x38] sm:$0xff] %vm239, %v198
        %248 = vst.msk [vmem:[%s163 + $0x40] sm:$0xff] %vm239, %v199
        %249 = vst.msk [vmem:[%s163 + $0x48] sm:$0xff] %vm239, %v200
        %250 = vst.msk [vmem:[%s163 + $0x50] sm:$0xff] %vm239, %v201
        %251 = vst.msk [vmem:[%s163 + $0x58] sm:$0xff] %vm239, %v202
        %252 = vst.msk [vmem:[%s163 + $0x60] sm:$0xff] %vm239, %v203
        %253 = vst.msk [vmem:[%s163 + $0x68] sm:$0xff] %vm239, %v204
        %254 = vst.msk [vmem:[%s163 + $0x70] sm:$0xff] %vm239, %v205
        %255 = vst.msk [vmem:[%s163 + $0x78] sm:$0xff] %vm239, %v206
        %256 = vst.msk [vmem:[%s163 + $0x80] sm:$0xff] %vm239, %v223
        %257 = vst.msk [vmem:[%s163 + $0x88] sm:$0xff] %vm239, %v224
        %258 = vst.msk [vmem:[%s163 + $0x90] sm:$0xff] %vm239, %v225
        %259 = vst.msk [vmem:[%s163 + $0x98] sm:$0xff] %vm239, %v226
        %260 = vst.msk [vmem:[%s163 + $0xa0] sm:$0xff] %vm239, %v227
        %261 = vst.msk [vmem:[%s163 + $0xa8] sm:$0xff] %vm239, %v228
        %262 = vst.msk [vmem:[%s163 + $0xb0] sm:$0xff] %vm239, %v229
        %263 = vst.msk [vmem:[%s163 + $0xb8] sm:$0xff] %vm239, %v230
        %264 = vst.msk [vmem:[%s163 + $0xc0] sm:$0xff] %vm239, %v231
        %265 = vst.msk [vmem:[%s163 + $0xc8] sm:$0xff] %vm239, %v232
        %266 = vst.msk [vmem:[%s163 + $0xd0] sm:$0xff] %vm239, %v233
        %267 = vst.msk [vmem:[%s163 + $0xd8] sm:$0xff] %vm239, %v234
        %268 = vst.msk [vmem:[%s163 + $0xe0] sm:$0xff] %vm239, %v235
        %269 = vst.msk [vmem:[%s163 + $0xe8] sm:$0xff] %vm239, %v236
        %270 = vst.msk [vmem:[%s163 + $0xf0] sm:$0xff] %vm239, %v237
        %271 = vst.msk [vmem:[%s163 + $0xf8] sm:$0xff] %vm239, %v238
        %s272 = smul.u32 32, %s20
        %p273 = scmp.lt.s32.totalorder %s19, 1
        %s274 = scalar_select %p273, %s19, 1
        %p275 = scmp.lt.s32.totalorder %s272, 31
        %s276 = scalar_select %p275, %s272, 31
        %s277 = smul.addr %s274, 32
        %s278 = sadd.s32 %s276, %s277
        %s279 = smul.addr %s278, 8
        %s280 = scalar_lea.vmem %s1, %s279
        // Predicated region
        $region29: #{tpu_custom_call.1} parent=23 // pred_check
          %p281 = pneg %p75
        $region30: #{tpu_custom_call.1} parent=23 // pred_check_branch
          %283 = sbr.rel (%p281) target = $region32
        $region31: #{tpu_custom_call.1} parent=23 // pred_region
          %s284 = smul.u32 32, %s20
        $region32: #{tpu_custom_call.1} parent=23 // pred_fallthru
          _
      $region24: #{tpu_custom_call.1} parent=5 // pred_fallthru
        _
      %p285 = scmp.le.s32.totalorder 2, %s10
      // Predicated region
      $region33: #{tpu_custom_call.1} parent=5 // pred_check
        %p286 = pneg %p285
      $region34: #{tpu_custom_call.1} parent=5 // pred_check_branch
        %288 = sbr.rel (%p286) target = $region36
      $region35: #{tpu_custom_call.1} parent=5 // pred_region
        %s289 = ssub.s32 %s10, 2
        // Predicated region
        $region37: #{tpu_custom_call.1} parent=35 // pred_check
          %p290 = pneg %p81
        $region38: #{tpu_custom_call.1} parent=35 // pred_check_branch
          %292 = sbr.rel (%p290) target = $region40
        $region39: #{tpu_custom_call.1} parent=35 // pred_region
          %s293 = smul.u32 32, %s22
          %p294 = scmp.lt.s32.totalorder %s21, 1
          %s295 = scalar_select %p294, %s21, 1
          %p296 = scmp.lt.s32.totalorder %s293, 31
          %s297 = scalar_select %p296, %s293, 31
          %s298 = smul.addr %s295, 32
          %s299 = sadd.s32 %s297, %s298
          %s300 = smul.addr %s299, 8
          %s301 = scalar_lea.vmem %s1, %s300
        $region40: #{tpu_custom_call.1} parent=35 // pred_fallthru
          _
      $region36: #{tpu_custom_call.1} parent=5 // pred_fallthru
        _
    $region6: #{tpu_custom_call.1} parent=1 // loop_footer
      %s14 = sadd.s32 1, %s10
    $region7: #{tpu_custom_call.1} parent=1 // loop_footer_branch
      %9 = sbr.rel target = $region3
    $region8: #{tpu_custom_call.1} parent=1 // loop_exit
      _
    %302 = vsyncpa [#allocation3], 1
    %s303 = scalar_lea.sflag [#allocation3], 1
    %304 = vsyncpa %s303, 1

</llo_original>
